<compile_context>
chip_gen: v7x
topology: tpu7x:2x2x1
jax: 0.10.0
libtpu: 0.0.40
codegen_flags: <defaults>
</compile_context>

<pallas_src>
import functools

import jax
import jax.numpy as jnp
from jax.experimental import pallas as pl
from jax.experimental.pallas import tpu as pltpu


def se_block_kernel(x_ref, w1_ref, w2_ref, o_ref, *, channels_on_lanes):
    # ---- Squeeze: global average pool, accumulated in f32 without making an
    # f32 copy of the slab (dtype= casts per-vreg inside the reduction).
    spatial_axis = 1 if channels_on_lanes else -1
    y = jnp.mean(x_ref[...], axis=spatial_axis, dtype=jnp.float32)    # (TB, C)

    # ---- Excitation: tiny batched MLP (one MXU push per layer for the whole
    # slab).  Weights are used in their stored dtype; only the tiny (TB, C) /
    # (TB, Cr) activations are cast to match.
    w1 = w1_ref[...]
    w2 = w2_ref[...]
    h = jnp.dot(y.astype(w1.dtype), w1, preferred_element_type=jnp.float32)
    h = jnp.maximum(h, 0.0)                                           # (TB, Crp)
    s = jnp.dot(h.astype(w2.dtype), w2, preferred_element_type=jnp.float32)
    s = jax.nn.sigmoid(s).astype(o_ref.dtype)                         # (TB, C)

    # ---- Scale: re-read the ref so the rescale stays a pipeline-friendly
    # vld -> vmul -> vst stream (no stretched whole-slab live range).
    if channels_on_lanes:
        o_ref[...] = x_ref[...] * s[:, None, :]
    else:
        o_ref[...] = x_ref[...] * s[:, :, None]


def _target_slab_bytes():
    """Per-generation slab target (HBM roofline vs ~0.35us per-step overhead)."""
    try:
        kind = jax.devices()[0].device_kind.lower()
    except Exception:
        kind = ""
    if "v5" in kind:
        return 2 << 20   # ~0.82 TB/s: 2 MiB already hides the per-step overhead
    if "v7" in kind:
        return 6 << 20   # 3.2 TB/s/TC: bigger slabs needed to stay roofline-bound
    return 4 << 20       # v6e default


def _pick_tile_batch(B, per_image_bytes, target_bytes, min_slab_bytes=512 << 10):
    """Batch elements per block: aim for ~target_bytes slabs, but keep >= 2
    grid steps (megacore) whenever each half is still a reasonable slab."""
    tb = max(1, min(B, target_bytes // max(per_image_bytes, 1)))
    if tb >= B and B >= 2 and (B // 2) * per_image_bytes >= min_slab_bytes:
        tb = pl.cdiv(B, 2)
    while B % tb:                      # need an exact divisor for clean tiling
        tb -= 1
    return tb


def se_block(x, w1, w2):
    """x: (B, C, H, W).  w1: (C, C//r), w2: (C//r, C) (right-multiply layout,
    no biases -- matches nn.Linear(..., bias=False) with weight.T)."""
    B, C, H, W = x.shape
    HW = H * W

    # Layout: keep a 128-divisible axis on lanes so DMA / vld / vmul / vst are
    # lane-dense (unmasked stores).
    channels_on_lanes = (HW % 128 != 0) and (C % 128 == 0)
    if channels_on_lanes:
        x_flat = jnp.transpose(x.reshape(B, C, HW), (0, 2, 1))        # (B, HW, C)
        x_block_of = lambda tb: (tb, HW, C)
    else:
        x_flat = x.reshape(B, C, HW)                                  # (B, C, HW)
        x_block_of = lambda tb: (tb, C, HW)

    # Pad the bottleneck dim up to a multiple of 8 (exact zero padding).
    Cr = w1.shape[1]
    Crp = max(8, -(-Cr // 8) * 8)
    if Crp != Cr:
        w1 = jnp.pad(w1, ((0, 0), (0, Crp - Cr)))
        w2 = jnp.pad(w2, ((0, Crp - Cr), (0, 0)))

    per_image_bytes = C * HW * x.dtype.itemsize
    TB = _pick_tile_batch(B, per_image_bytes, _target_slab_bytes())
    grid = (B // TB,)
    block_bytes = TB * per_image_bytes

    # VMEM budget: double-buffered x in + out is 4x the block.  If a single
    # image plane is so large that 4x would blow past ~44 MiB (v7x has 64 MiB
    # physical VMEM per TensorCore), drop to single buffering on x / out.
    single_buffer = 4 * block_bytes > (44 << 20)
    x_buffers = 1 if single_buffer else 2

    weight_bytes = (w1.size * w1.dtype.itemsize) + (w2.size * w2.dtype.itemsize)
    vmem_limit = 2 * x_buffers * block_bytes + 2 * weight_bytes + (4 << 20)
    vmem_limit = int(min(max(vmem_limit, 16 << 20), 64 << 20))

    x_block = x_block_of(TB)
    if single_buffer:
        x_spec = pl.BlockSpec(x_block, lambda b: (b, 0, 0),
                              pipeline_mode=pl.Buffered(1))
    else:
        x_spec = pl.BlockSpec(x_block, lambda b: (b, 0, 0))

    kernel = functools.partial(se_block_kernel,
                               channels_on_lanes=channels_on_lanes)

    out_flat = pl.pallas_call(
        kernel,
        out_shape=jax.ShapeDtypeStruct(x_flat.shape, x.dtype),
        grid_spec=pltpu.PrefetchScalarGridSpec(
            num_scalar_prefetch=0,
            grid=grid,
            in_specs=[
                x_spec,
                # Constant index maps: weights DMA'd once, resident across steps.
                pl.BlockSpec(w1.shape, lambda b: (0, 0)),
                pl.BlockSpec(w2.shape, lambda b: (0, 0)),
            ],
            out_specs=x_spec,
        ),
        compiler_params=pltpu.CompilerParams(
            dimension_semantics=("parallel",),
            vmem_limit_bytes=vmem_limit,
        ),
    )(x_flat, w1, w2)

    if channels_on_lanes:
        out_flat = jnp.transpose(out_flat, (0, 2, 1))
    return out_flat.reshape(B, C, H, W)


def reference_se_block(x, w1, w2):
    y = jnp.mean(x, axis=(2, 3))                 # (B, C)
    h = jnp.maximum(y @ w1, 0.0)                 # (B, C//r)
    s = jax.nn.sigmoid(h @ w2)                   # (B, C)
    return x * s[:, :, None, None]


if __name__ == "__main__":
    B, C, H, W = 2, 64, 16, 16
    ratio = 16
    Cr = C // ratio

    key = jax.random.PRNGKey(0)
    kx, k1, k2 = jax.random.split(key, 3)

    x = jax.random.normal(kx, (B, C, H, W), dtype=jnp.float32)
    # PyTorch Linear stores (out, in); we use the transposed (in, out) layout
    # for right-multiplication.  bias=False as in the module.
    w1 = (jax.random.normal(k1, (C, Cr), dtype=jnp.float32)
          * (1.0 / jnp.sqrt(C)))
    w2 = (jax.random.normal(k2, (Cr, C), dtype=jnp.float32)
          * (1.0 / jnp.sqrt(Cr)))

    out = se_block(x, w1, w2)
    jax.block_until_ready(out)

    ref = reference_se_block(x, w1, w2)
    assert out.shape == (B, C, H, W)
    assert jnp.allclose(out, ref, atol=1e-5, rtol=1e-5)

    print("KERNEL_OK")
</pallas_src>

<mosaic_0001>
module attributes {stable_mosaic.version = 11 : i64} {
  func.func @se_block_kernel(%arg0: i32, %arg1: memref<2x64x256xf32, #tpu.memory_space<vmem>>, %arg2: memref<64x8xf32, #tpu.memory_space<vmem>>, %arg3: memref<8x64xf32, #tpu.memory_space<vmem>>, %arg4: memref<2x64x256xf32, #tpu.memory_space<vmem>>) attributes {dimension_semantics = [#tpu.dimension_semantics<parallel>], iteration_bounds = array<i64: 1>, scalar_prefetch = 0 : i64, scratch_operands = 0 : i64, tpu.core_type = #tpu.core_type<tc>, window_params = [{transform_indices = @transform_0, window_bounds = array<i64: 2, 64, 256>}, {pipeline_mode = #tpu.pipeline_mode<synchronous>, transform_indices = @transform_1, window_bounds = array<i64: 64, 8>}, {pipeline_mode = #tpu.pipeline_mode<synchronous>, transform_indices = @transform_2, window_bounds = array<i64: 8, 64>}, {transform_indices = @transform_3, window_bounds = array<i64: 2, 64, 256>}]} {
    %c0 = arith.constant 0 : index
    %c0_0 = arith.constant 0 : index
    %c0_1 = arith.constant 0 : index
    %0 = vector.load %arg1[%c0, %c0_0, %c0_1] : memref<2x64x256xf32, #tpu.memory_space<vmem>>, vector<2x64x256xf32>
    %cst = arith.constant dense<0.000000e+00> : vector<2x64xf32>
    %1 = vector.multi_reduction <add>, %0, %cst [2] : vector<2x64x256xf32> to vector<2x64xf32>
    %cst_2 = arith.constant 2.560000e+02 : f32
    %2 = vector.broadcast %cst_2 : f32 to vector<2x64xf32>
    %3 = arith.divf %1, %2 : vector<2x64xf32>
    %c0_3 = arith.constant 0 : index
    %c0_4 = arith.constant 0 : index
    %4 = vector.load %arg2[%c0_3, %c0_4] : memref<64x8xf32, #tpu.memory_space<vmem>>, vector<64x8xf32>
    %c0_5 = arith.constant 0 : index
    %c0_6 = arith.constant 0 : index
    %5 = vector.load %arg3[%c0_5, %c0_6] : memref<8x64xf32, #tpu.memory_space<vmem>>, vector<8x64xf32>
    %cst_7 = arith.constant dense<0.000000e+00> : vector<2x8xf32>
    %6 = tpu.matmul %3, %4, %cst_7 {dimension_numbers = #tpu.dot_dimension_numbers<[1], [0], [0], [1], [0, 0, 1, 1], [], []>} : vector<2x64xf32>, vector<64x8xf32>, vector<2x8xf32> -> vector<2x8xf32>
    %cst_8 = arith.constant 0.000000e+00 : f32
    %7 = vector.broadcast %cst_8 : f32 to vector<2x8xf32>
    %8 = arith.maximumf %6, %7 : vector<2x8xf32>
    %cst_9 = arith.constant dense<0.000000e+00> : vector<2x64xf32>
    %9 = tpu.matmul %8, %5, %cst_9 {dimension_numbers = #tpu.dot_dimension_numbers<[1], [0], [0], [1], [0, 0, 1, 1], [], []>} : vector<2x8xf32>, vector<8x64xf32>, vector<2x64xf32> -> vector<2x64xf32>
    %10 = arith.negf %9 : vector<2x64xf32>
    %11 = math.exp %10 : vector<2x64xf32>
    %cst_10 = arith.constant 1.000000e+00 : f32
    %12 = vector.broadcast %cst_10 : f32 to vector<2x64xf32>
    %13 = arith.addf %12, %11 : vector<2x64xf32>
    %14 = arith.divf %12, %13 : vector<2x64xf32>
    %c0_11 = arith.constant 0 : index
    %c0_12 = arith.constant 0 : index
    %c0_13 = arith.constant 0 : index
    %15 = vector.load %arg1[%c0_11, %c0_12, %c0_13] : memref<2x64x256xf32, #tpu.memory_space<vmem>>, vector<2x64x256xf32>
    %16 = vector.shape_cast %14 : vector<2x64xf32> to vector<2x64x1xf32>
    %17 = vector.broadcast %16 : vector<2x64x1xf32> to vector<2x64x256xf32>
    %18 = arith.mulf %15, %17 : vector<2x64x256xf32>
    %c0_14 = arith.constant 0 : index
    %c0_15 = arith.constant 0 : index
    %c0_16 = arith.constant 0 : index
    %19 = vector.load %arg4[%c0_14, %c0_15, %c0_16] : memref<2x64x256xf32, #tpu.memory_space<vmem>>, vector<2x64x256xf32>
    tpu.vector_store %arg4[%c0_14, %c0_15, %c0_16], %18 {strides = array<i32>} : memref<2x64x256xf32, #tpu.memory_space<vmem>>, vector<2x64x256xf32>,
    return
  }
  func.func @transform_0(%arg0: i32) -> (i32, i32, i32) {
    %c0_i32 = arith.constant 0 : i32
    %c0_i32_0 = arith.constant 0 : i32
    %c0_i32_1 = arith.constant 0 : i32
    return %arg0, %c0_i32, %c0_i32_0 : i32, i32, i32
  }
  func.func @transform_1(%arg0: i32) -> (i32, i32) {
    %c0_i32 = arith.constant 0 : i32
    %c0_i32_0 = arith.constant 0 : i32
    %c0_i32_1 = arith.constant 0 : i32
    return %c0_i32, %c0_i32_0 : i32, i32
  }
  func.func @transform_2(%arg0: i32) -> (i32, i32) {
    %c0_i32 = arith.constant 0 : i32
    %c0_i32_0 = arith.constant 0 : i32
    %c0_i32_1 = arith.constant 0 : i32
    return %c0_i32, %c0_i32_0 : i32, i32
  }
  func.func @transform_3(%arg0: i32) -> (i32, i32, i32) {
    %c0_i32 = arith.constant 0 : i32
    %c0_i32_0 = arith.constant 0 : i32
    %c0_i32_1 = arith.constant 0 : i32
    return %arg0, %c0_i32, %c0_i32_0 : i32, i32, i32
  }
}

</mosaic_0001>

<llo_original>
// kernel: tpu_custom_call.1
$region0: #{tpu_custom_call.1}
  #allocation0 [shape = 'u32[]', space=smem, size = 0x4, offset = 0x4, fixed_abs, tag = 'smem constant byte address 0x4 - core index']
  #allocation1 [shape = 'u32[144,128]{1,0:T(1,128)}', space=vmem, size = 0x12000, scoped, tag = 'internal scratch']
  %s0 = inlined_call_operand.hbm [shape: f32[2,64,256], index: 0, kind: input, shape index: {}]
  %s1 = inlined_call_operand.vmem [shape: f32[64,8], index: 1, kind: input, shape index: {}]
  %s2 = inlined_call_operand.vmem [shape: f32[8,64], index: 2, kind: input, shape index: {}]
  %s3 = inlined_call_operand.hbm [shape: f32[2,64,256], index: 3, kind: output, shape index: {}]
  %s4 = sld [smem:[#allocation0]]
  $region26: #{tpu_custom_call.1} parent=0
    _
  %s6 = ssub.s32 1, %s4
  %s7 = scalar_select 0, %s6, %s4
  $region1: #{tpu_custom_call.1} parent=0
    #allocation2 [shape = 'u8[131072]{0}', space=vmem, size = 0x20000, scoped, tag = 'input window, operand 0, single buffered']
    #allocation3 [shape = 's32[1]{0}', space=sflag, size = 0x4, scoped, tag = 'scoped memory for tpu_custom_call.1']
    #allocation4 [shape = 's32[1]{0}', space=sflag, size = 0x4, scoped, tag = 'scoped memory for tpu_custom_call.1']
    #allocation5 [shape = 'u8[131072]{0}', space=vmem, size = 0x20000, scoped, tag = 'output window, operand 0, single buffered']
    %8 = vsyncpa [#allocation3], 0
    %9 = vsyncpa [#allocation4], 0
    // Predicated region
    $region2: #{tpu_custom_call.1} parent=1 // pred_check
      _
    $region3: #{tpu_custom_call.1} parent=1 // pred_check_branch
      %11 = sbr.rel (0) target = $region5
    $region4: #{tpu_custom_call.1} parent=1 // pred_region
      %s13 = ssub.s32 4096, 4096
      %14 = vsyncadd [#allocation3], %s13
      %s15 = sshll.u32 [#allocation2], 4
      %s16 = int_to_ptr.vmem [resolvable:$true] %s15
      %21 = dma.hbm_to_vmem [thread:$0]  %s0, 4096, %s16, [#allocation3], 256, 256, 16
    $region5: #{tpu_custom_call.1} parent=1 // pred_fallthru
      _
    // Predicated region
    $region6: #{tpu_custom_call.1} parent=1 // pred_check
      _
    $region7: #{tpu_custom_call.1} parent=1 // pred_check_branch
      %23 = sbr.rel (0) target = $region9
    $region8: #{tpu_custom_call.1} parent=1 // pred_region
      _
    $region9: #{tpu_custom_call.1} parent=1 // pred_fallthru
      _
    // Predicated region
    $region10: #{tpu_custom_call.1} parent=1 // pred_check
      _
    $region11: #{tpu_custom_call.1} parent=1 // pred_check_branch
      %25 = sbr.rel (0) target = $region13
    $region12: #{tpu_custom_call.1} parent=1 // pred_region
      _
    $region13: #{tpu_custom_call.1} parent=1 // pred_fallthru
      _
    // Predicated region
    $region14: #{tpu_custom_call.1} parent=1 // pred_check
      _
    $region15: #{tpu_custom_call.1} parent=1 // pred_check_branch
      %27 = sbr.rel (0) target = $region17
    $region16: #{tpu_custom_call.1} parent=1 // pred_region
      %28 = dma.done [#allocation3], 4096
    $region17: #{tpu_custom_call.1} parent=1 // pred_fallthru
      _
    %v29 = vld [vmem:[#allocation2] sm:$0xff]
    %v30 = vld [vmem:[#allocation2 + $0x8] sm:$0xff]
    %v31 = vld [vmem:[#allocation2 + $0x10] sm:$0xff]
    %v32 = vld [vmem:[#allocation2 + $0x18] sm:$0xff]
    %v33 = vld [vmem:[#allocation2 + $0x20] sm:$0xff]
    %v34 = vld [vmem:[#allocation2 + $0x28] sm:$0xff]
    %v35 = vld [vmem:[#allocation2 + $0x30] sm:$0xff]
    %v36 = vld [vmem:[#allocation2 + $0x38] sm:$0xff]
    %v37 = vld [vmem:[#allocation2 + $0x40] sm:$0xff]
    %v38 = vld [vmem:[#allocation2 + $0x48] sm:$0xff]
    %v39 = vld [vmem:[#allocation2 + $0x50] sm:$0xff]
    %v40 = vld [vmem:[#allocation2 + $0x58] sm:$0xff]
    %v41 = vld [vmem:[#allocation2 + $0x60] sm:$0xff]
    %v42 = vld [vmem:[#allocation2 + $0x68] sm:$0xff]
    %v43 = vld [vmem:[#allocation2 + $0x70] sm:$0xff]
    %v44 = vld [vmem:[#allocation2 + $0x78] sm:$0xff]
    %v45 = vld [vmem:[#allocation2 + $0x80] sm:$0xff]
    %v46 = vld [vmem:[#allocation2 + $0x88] sm:$0xff]
    %v47 = vld [vmem:[#allocation2 + $0x90] sm:$0xff]
    %v48 = vld [vmem:[#allocation2 + $0x98] sm:$0xff]
    %v49 = vld [vmem:[#allocation2 + $0xa0] sm:$0xff]
    %v50 = vld [vmem:[#allocation2 + $0xa8] sm:$0xff]
    %v51 = vld [vmem:[#allocation2 + $0xb0] sm:$0xff]
    %v52 = vld [vmem:[#allocation2 + $0xb8] sm:$0xff]
    %v53 = vld [vmem:[#allocation2 + $0xc0] sm:$0xff]
    %v54 = vld [vmem:[#allocation2 + $0xc8] sm:$0xff]
    %v55 = vld [vmem:[#allocation2 + $0xd0] sm:$0xff]
    %v56 = vld [vmem:[#allocation2 + $0xd8] sm:$0xff]
    %v57 = vld [vmem:[#allocation2 + $0xe0] sm:$0xff]
    %v58 = vld [vmem:[#allocation2 + $0xe8] sm:$0xff]
    %v59 = vld [vmem:[#allocation2 + $0xf0] sm:$0xff]
    %v60 = vld [vmem:[#allocation2 + $0xf8] sm:$0xff]
    %v61 = vadd.f32 %v29, %v30
    %62 = vadd.xlane.f32.xlu0 %v61
    %v63 = vpop.xlane.xlu0 %62
    %v64 = vadd.f32 %v31, %v32
    %65 = vadd.xlane.f32.xlu0 %v64
    %v66 = vpop.xlane.xlu0 %65
    %v67 = vadd.f32 %v33, %v34
    %68 = vadd.xlane.f32.xlu0 %v67
    %v69 = vpop.xlane.xlu0 %68
    %v70 = vadd.f32 %v35, %v36
    %71 = vadd.xlane.f32.xlu0 %v70
    %v72 = vpop.xlane.xlu0 %71
    %v73 = vadd.f32 %v37, %v38
    %74 = vadd.xlane.f32.xlu0 %v73
    %v75 = vpop.xlane.xlu0 %74
    %v76 = vadd.f32 %v39, %v40
    %77 = vadd.xlane.f32.xlu0 %v76
    %v78 = vpop.xlane.xlu0 %77
    %v79 = vadd.f32 %v41, %v42
    %80 = vadd.xlane.f32.xlu0 %v79
    %v81 = vpop.xlane.xlu0 %80
    %v82 = vadd.f32 %v43, %v44
    %83 = vadd.xlane.f32.xlu0 %v82
    %v84 = vpop.xlane.xlu0 %83
    %v85 = vadd.f32 %v45, %v46
    %86 = vadd.xlane.f32.xlu0 %v85
    %v87 = vpop.xlane.xlu0 %86
    %v88 = vadd.f32 %v47, %v48
    %89 = vadd.xlane.f32.xlu0 %v88
    %v90 = vpop.xlane.xlu0 %89
    %v91 = vadd.f32 %v49, %v50
    %92 = vadd.xlane.f32.xlu0 %v91
    %v93 = vpop.xlane.xlu0 %92
    %v94 = vadd.f32 %v51, %v52
    %95 = vadd.xlane.f32.xlu0 %v94
    %v96 = vpop.xlane.xlu0 %95
    %v97 = vadd.f32 %v53, %v54
    %98 = vadd.xlane.f32.xlu0 %v97
    %v99 = vpop.xlane.xlu0 %98
    %v100 = vadd.f32 %v55, %v56
    %101 = vadd.xlane.f32.xlu0 %v100
    %v102 = vpop.xlane.xlu0 %101
    %v103 = vadd.f32 %v57, %v58
    %104 = vadd.xlane.f32.xlu0 %v103
    %v105 = vpop.xlane.xlu0 %104
    %v106 = vadd.f32 %v59, %v60
    %107 = vadd.xlane.f32.xlu0 %v106
    %v108 = vpop.xlane.xlu0 %107
    %v109 = vrcp.pop 256.0
    %v110 = vmul.f32 %v63, %v109
    %v111 = vmul.f32 %v66, %v109
    %v112 = vmul.f32 %v69, %v109
    %v113 = vmul.f32 %v72, %v109
    %v114 = vmul.f32 %v75, %v109
    %v115 = vmul.f32 %v78, %v109
    %v116 = vmul.f32 %v81, %v109
    %v117 = vmul.f32 %v84, %v109
    %v118 = vmul.f32 %v87, %v109
    %v119 = vmul.f32 %v90, %v109
    %v120 = vmul.f32 %v93, %v109
    %v121 = vmul.f32 %v96, %v109
    %v122 = vmul.f32 %v99, %v109
    %v123 = vmul.f32 %v102, %v109
    %v124 = vmul.f32 %v105, %v109
    %v125 = vmul.f32 %v108, %v109
    %v126 = vld [vmem:[%s1] sm:$0xff]
    %v127 = vld [vmem:[%s1 + $0x8] sm:$0xff]
    %v128 = vld [vmem:[%s1 + $0x10] sm:$0xff]
    %v129 = vld [vmem:[%s1 + $0x18] sm:$0xff]
    %v130 = vld [vmem:[%s1 + $0x20] sm:$0xff]
    %v131 = vld [vmem:[%s1 + $0x28] sm:$0xff]
    %v132 = vld [vmem:[%s1 + $0x30] sm:$0xff]
    %v133 = vld [vmem:[%s1 + $0x38] sm:$0xff]
    %v134 = vld [vmem:[%s2] sm:$0xff]
    %v151 = vlaneseq
    %v152 = vand.u32 %v151, 127
    %v153 = vlaneseq
    %v154 = vshrl.u32 %v153, 7
    %v155 = vsub.s32 %v152, %v154
    %v156 = vrot.slane %v110, %v155
    %v157 = vadd.s32 %v152, 4294967288
    %v158 = vlaneseq
    %v159 = vshrl.u32 %v158, 7
    %v160 = vsub.s32 %v157, %v159
    %v161 = vrot.slane %v111, %v160
    %vm162 = vcmask 130112
    %v163 = vsel %vm162, %v161, %v156
    %v164 = vadd.s32 %v152, 4294967280
    %v165 = vlaneseq
    %v166 = vshrl.u32 %v165, 7
    %v167 = vsub.s32 %v164, %v166
    %v168 = vrot.slane %v112, %v167
    %vm169 = vcmask 195712
    %v170 = vsel %vm169, %v168, %v163
    %v171 = vadd.s32 %v152, 4294967272
    %v172 = vlaneseq
    %v173 = vshrl.u32 %v172, 7
    %v174 = vsub.s32 %v171, %v173
    %v175 = vrot.slane %v113, %v174
    %vm176 = vcmask 261312
    %v177 = vsel %vm176, %v175, %v170
    %v178 = vadd.s32 %v152, 4294967264
    %v179 = vlaneseq
    %v180 = vshrl.u32 %v179, 7
    %v181 = vsub.s32 %v178, %v180
    %v182 = vrot.slane %v114, %v181
    %vm183 = vcmask 326912
    %v184 = vsel %vm183, %v182, %v177
    %v185 = vadd.s32 %v152, 4294967256
    %v186 = vlaneseq
    %v187 = vshrl.u32 %v186, 7
    %v188 = vsub.s32 %v185, %v187
    %v189 = vrot.slane %v115, %v188
    %vm190 = vcmask 392512
    %v191 = vsel %vm190, %v189, %v184
    %v192 = vadd.s32 %v152, 4294967248
    %v193 = vlaneseq
    %v194 = vshrl.u32 %v193, 7
    %v195 = vsub.s32 %v192, %v194
    %v196 = vrot.slane %v116, %v195
    %vm197 = vcmask 458112
    %v198 = vsel %vm197, %v196, %v191
    %v199 = vadd.s32 %v152, 4294967240
    %v200 = vlaneseq
    %v201 = vshrl.u32 %v200, 7
    %v202 = vsub.s32 %v199, %v201
    %v203 = vrot.slane %v117, %v202
    %vm204 = vcmask 523712
    %v205 = vsel %vm204, %v203, %v198
    %v206 = vlaneseq
    %v207 = vshrl.u32 %v206, 7
    %v208 = vsub.s32 %v152, %v207
    %v209 = vrot.slane %v118, %v208
    %v210 = vlaneseq
    %v211 = vshrl.u32 %v210, 7
    %v212 = vsub.s32 %v157, %v211
    %v213 = vrot.slane %v119, %v212
    %v214 = vsel %vm162, %v213, %v209
    %v215 = vlaneseq
    %v216 = vshrl.u32 %v215, 7
    %v217 = vsub.s32 %v164, %v216
    %v218 = vrot.slane %v120, %v217
    %v219 = vsel %vm169, %v218, %v214
    %v220 = vlaneseq
    %v221 = vshrl.u32 %v220, 7
    %v222 = vsub.s32 %v171, %v221
    %v223 = vrot.slane %v121, %v222
    %v224 = vsel %vm176, %v223, %v219
    %v225 = vlaneseq
    %v226 = vshrl.u32 %v225, 7
    %v227 = vsub.s32 %v178, %v226
    %v228 = vrot.slane %v122, %v227
    %v229 = vsel %vm183, %v228, %v224
    %v230 = vlaneseq
    %v231 = vshrl.u32 %v230, 7
    %v232 = vsub.s32 %v185, %v231
    %v233 = vrot.slane %v123, %v232
    %v234 = vsel %vm190, %v233, %v229
    %v235 = vlaneseq
    %v236 = vshrl.u32 %v235, 7
    %v237 = vsub.s32 %v192, %v236
    %v238 = vrot.slane %v124, %v237
    %v239 = vsel %vm197, %v238, %v234
    %v240 = vlaneseq
    %v241 = vshrl.u32 %v240, 7
    %v242 = vsub.s32 %v199, %v241
    %v243 = vrot.slane %v125, %v242
    %v244 = vsel %vm204, %v243, %v239
    %vm245 = vcmask 1041409
    %v246 = vsel %vm245, %v244, %v205
    %vm247 = vcmask 523264
    %v248 = vsel %vm247, %v246, 0
    %250 = vmatprep.subr.mxu0 0.0
    %251 = vmatpush1.msra.mxu0 %v126
    %252 = vmatprep.subr.mxu0 0.0
    %253 = vmatpush1.msra.mxu0 %v127
    %254 = vmatprep.subr.mxu0 0.0
    %255 = vmatpush1.msra.mxu0 %v128
    %256 = vmatprep.subr.mxu0 0.0
    %257 = vmatpush1.msra.mxu0 %v129
    %258 = vmatprep.subr.mxu0 0.0
    %259 = vmatpush1.msra.mxu0 %v130
    %260 = vmatprep.subr.mxu0 0.0
    %261 = vmatpush1.msra.mxu0 %v131
    %262 = vmatprep.subr.mxu0 0.0
    %263 = vmatpush1.msra.mxu0 %v132
    %264 = vmatprep.subr.mxu0 0.0
    %265 = vmatpush1.msra.mxu0 %v133
    %266 = vmatprep.subr.mxu0 0.0
    %267 = vmatpush1.msra.mxu0 0.0
    %268 = vmatprep.subr.mxu0 0.0
    %269 = vmatpush1.msra.mxu0 0.0
    %270 = vmatprep.subr.mxu0 0.0
    %271 = vmatpush1.msra.mxu0 0.0
    %272 = vmatprep.subr.mxu0 0.0
    %273 = vmatpush1.msra.mxu0 0.0
    %274 = vmatprep.subr.mxu0 0.0
    %275 = vmatpush1.msra.mxu0 0.0
    %276 = vmatprep.subr.mxu0 0.0
    %277 = vmatpush1.msra.mxu0 0.0
    %278 = vmatprep.subr.mxu0 0.0
    %279 = vmatpush1.msra.mxu0 0.0
    %280 = vmatprep.subr.mxu0 0.0
    %281 = vmatpush1.msra.mxu0 0.0
    %282 = vmatprep.subr.mxu0 0.0
    %283 = vmatpush1.msra.mxu0 0.0
    %284 = vmatprep.subr.mxu0 0.0
    %285 = vmatpush1.msra.mxu0 0.0
    %286 = vmatprep.subr.mxu0 0.0
    %287 = vmatpush1.msra.mxu0 0.0
    %288 = vmatprep.subr.mxu0 0.0
    %289 = vmatpush1.msra.mxu0 0.0
    %290 = vmatprep.subr.mxu0 0.0
    %291 = vmatpush1.msra.mxu0 0.0
    %292 = vmatprep.subr.mxu0 0.0
    %293 = vmatpush1.msra.mxu0 0.0
    %294 = vmatprep.subr.mxu0 0.0
    %295 = vmatpush1.msra.mxu0 0.0
    %296 = vmatprep.subr.mxu0 0.0
    %297 = vmatpush1.msra.mxu0 0.0
    %298 = vmatprep.subr.mxu0 0.0
    %299 = vmatpush1.msra.mxu0 0.0
    %300 = vmatprep.subr.mxu0 0.0
    %301 = vmatpush1.msra.mxu0 0.0
    %302 = vmatprep.subr.mxu0 0.0
    %303 = vmatpush1.msra.mxu0 0.0
    %304 = vmatprep.subr.mxu0 0.0
    %305 = vmatpush1.msra.mxu0 0.0
    %306 = vmatprep.subr.mxu0 0.0
    %307 = vmatpush1.msra.mxu0 0.0
    %308 = vmatprep.subr.mxu0 0.0
    %309 = vmatpush1.msra.mxu0 0.0
    %310 = vmatprep.subr.mxu0 0.0
    %311 = vmatpush1.msra.mxu0 0.0
    %312 = vmatprep.subr.mxu0 0.0
    %313 = vmatpush1.msra.mxu0 0.0
    %314 = vmatprep.mubr.f32.mxu0 0.0
    %315 = vmatmul.mubr.f32.gmra.mrb[0].mxu0 %v248
    %v316 = vpop.f32.mrb[0].mxu0
    %v317 = vadd.f32 0.0, %v316
    %v318 = vpop.f32.mrb[0].mxu0
    %319 = vdwg.mxu0
    %v320 = vmax.f32 %v317, 0.0
    %vm321 = vcmask 64512
    %v323 = vsel %vm321, %v320, 0
    %325 = vmatprep.subr.mxu0 0.0
    %326 = vmatpush1.msra.mxu0 %v134
    %327 = vmatprep.subr.mxu0 0.0
    %328 = vmatpush1.msra.mxu0 0.0
    %329 = vmatprep.subr.mxu0 0.0
    %330 = vmatpush1.msra.mxu0 0.0
    %331 = vmatprep.subr.mxu0 0.0
    %332 = vmatpush1.msra.mxu0 0.0
    %333 = vmatprep.subr.mxu0 0.0
    %334 = vmatpush1.msra.mxu0 0.0
    %335 = vmatprep.subr.mxu0 0.0
    %336 = vmatpush1.msra.mxu0 0.0
    %337 = vmatprep.subr.mxu0 0.0
    %338 = vmatpush1.msra.mxu0 0.0
    %339 = vmatprep.subr.mxu0 0.0
    %340 = vmatpush1.msra.mxu0 0.0
    %341 = vmatprep.subr.mxu0 0.0
    %342 = vmatpush1.msra.mxu0 0.0
    %343 = vmatprep.subr.mxu0 0.0
    %344 = vmatpush1.msra.mxu0 0.0
    %345 = vmatprep.subr.mxu0 0.0
    %346 = vmatpush1.msra.mxu0 0.0
    %347 = vmatprep.subr.mxu0 0.0
    %348 = vmatpush1.msra.mxu0 0.0
    %349 = vmatprep.subr.mxu0 0.0
    %350 = vmatpush1.msra.mxu0 0.0
    %351 = vmatprep.subr.mxu0 0.0
    %352 = vmatpush1.msra.mxu0 0.0
    %353 = vmatprep.subr.mxu0 0.0
    %354 = vmatpush1.msra.mxu0 0.0
    %355 = vmatprep.subr.mxu0 0.0
    %356 = vmatpush1.msra.mxu0 0.0
    %357 = vmatprep.subr.mxu0 0.0
    %358 = vmatpush1.msra.mxu0 0.0
    %359 = vmatprep.subr.mxu0 0.0
    %360 = vmatpush1.msra.mxu0 0.0
    %361 = vmatprep.subr.mxu0 0.0
    %362 = vmatpush1.msra.mxu0 0.0
    %363 = vmatprep.subr.mxu0 0.0
    %364 = vmatpush1.msra.mxu0 0.0
    %365 = vmatprep.subr.mxu0 0.0
    %366 = vmatpush1.msra.mxu0 0.0
    %367 = vmatprep.subr.mxu0 0.0
    %368 = vmatpush1.msra.mxu0 0.0
    %369 = vmatprep.subr.mxu0 0.0
    %370 = vmatpush1.msra.mxu0 0.0
    %371 = vmatprep.subr.mxu0 0.0
    %372 = vmatpush1.msra.mxu0 0.0
    %373 = vmatprep.subr.mxu0 0.0
    %374 = vmatpush1.msra.mxu0 0.0
    %375 = vmatprep.subr.mxu0 0.0
    %376 = vmatpush1.msra.mxu0 0.0
    %377 = vmatprep.subr.mxu0 0.0
    %378 = vmatpush1.msra.mxu0 0.0
    %379 = vmatprep.subr.mxu0 0.0
    %380 = vmatpush1.msra.mxu0 0.0
    %381 = vmatprep.subr.mxu0 0.0
    %382 = vmatpush1.msra.mxu0 0.0
    %383 = vmatprep.subr.mxu0 0.0
    %384 = vmatpush1.msra.mxu0 0.0
    %385 = vmatprep.subr.mxu0 0.0
    %386 = vmatpush1.msra.mxu0 0.0
    %387 = vmatprep.subr.mxu0 0.0
    %388 = vmatpush1.msra.mxu0 0.0
    %389 = vmatprep.mubr.f32.mxu0 0.0
    %390 = vmatmul.mubr.f32.gmra.mrb[0].mxu0 %v323
    %v391 = vpop.f32.mrb[0].mxu0
    %v392 = vadd.f32 0.0, %v391
    %v393 = vpop.f32.mrb[0].mxu0
    %394 = vdwg.mxu0
    %v395 = vxor.u32 %v392, 2147483648
    %v396 = vmul.f32 %v395, 1.442695
    %v397 = vpow.pop %v396
    %v398 = vadd.f32 %v397, 1.0
    %v399 = vrcp.pop %v398
    %v400 = vmul.f32 1.0, %v399
    %v401 = vlaneseq
    %v402 = vshrl.u32 %v401, 7
    %v403 = vsub.s32 0, %v402
    %v404 = vrot.slane %v400, %v403
    %406 = vbcast.lane.b32.xlu0 %v404, 256
    %v407 = vpop.permute.xlu0 %406
    %s409 = sor.u32 256, 8
    %410 = vbcast.lane.b32.xlu0 %v404, %s409
    %v411 = vpop.permute.xlu0 %410
    %s413 = sor.u32 256, 16
    %414 = vbcast.lane.b32.xlu0 %v404, %s413
    %v415 = vpop.permute.xlu0 %414
    %s417 = sor.u32 256, 24
    %418 = vbcast.lane.b32.xlu0 %v404, %s417
    %v419 = vpop.permute.xlu0 %418
    %s421 = sor.u32 256, 32
    %422 = vbcast.lane.b32.xlu0 %v404, %s421
    %v423 = vpop.permute.xlu0 %422
    %s425 = sor.u32 256, 40
    %426 = vbcast.lane.b32.xlu0 %v404, %s425
    %v427 = vpop.permute.xlu0 %426
    %s429 = sor.u32 256, 48
    %430 = vbcast.lane.b32.xlu0 %v404, %s429
    %v431 = vpop.permute.xlu0 %430
    %s433 = sor.u32 256, 56
    %434 = vbcast.lane.b32.xlu0 %v404, %s433
    %v435 = vpop.permute.xlu0 %434
    %v436 = vlaneseq
    %v437 = vshrl.u32 %v436, 7
    %v438 = vsub.s32 1, %v437
    %v439 = vrot.slane %v400, %v438
    %441 = vbcast.lane.b32.xlu0 %v439, 256
    %v442 = vpop.permute.xlu0 %441
    %s444 = sor.u32 256, 8
    %445 = vbcast.lane.b32.xlu0 %v439, %s444
    %v446 = vpop.permute.xlu0 %445
    %s448 = sor.u32 256, 16
    %449 = vbcast.lane.b32.xlu0 %v439, %s448
    %v450 = vpop.permute.xlu0 %449
    %s452 = sor.u32 256, 24
    %453 = vbcast.lane.b32.xlu0 %v439, %s452
    %v454 = vpop.permute.xlu0 %453
    %s456 = sor.u32 256, 32
    %457 = vbcast.lane.b32.xlu0 %v439, %s456
    %v458 = vpop.permute.xlu0 %457
    %s460 = sor.u32 256, 40
    %461 = vbcast.lane.b32.xlu0 %v439, %s460
    %v462 = vpop.permute.xlu0 %461
    %s464 = sor.u32 256, 48
    %465 = vbcast.lane.b32.xlu0 %v439, %s464
    %v466 = vpop.permute.xlu0 %465
    %s468 = sor.u32 256, 56
    %469 = vbcast.lane.b32.xlu0 %v439, %s468
    %v470 = vpop.permute.xlu0 %469
    %v471 = vmul.f32 %v29, %v407
    %v472 = vmul.f32 %v30, %v407
    %v473 = vmul.f32 %v31, %v411
    %v474 = vmul.f32 %v32, %v411
    %v475 = vmul.f32 %v33, %v415
    %v476 = vmul.f32 %v34, %v415
    %v477 = vmul.f32 %v35, %v419
    %v478 = vmul.f32 %v36, %v419
    %v479 = vmul.f32 %v37, %v423
    %v480 = vmul.f32 %v38, %v423
    %v481 = vmul.f32 %v39, %v427
    %v482 = vmul.f32 %v40, %v427
    %v483 = vmul.f32 %v41, %v431
    %v484 = vmul.f32 %v42, %v431
    %v485 = vmul.f32 %v43, %v435
    %v486 = vmul.f32 %v44, %v435
    %v487 = vmul.f32 %v45, %v442
    %v488 = vmul.f32 %v46, %v442
    %v489 = vmul.f32 %v47, %v446
    %v490 = vmul.f32 %v48, %v446
    %v491 = vmul.f32 %v49, %v450
    %v492 = vmul.f32 %v50, %v450
    %v493 = vmul.f32 %v51, %v454
    %v494 = vmul.f32 %v52, %v454
    %v495 = vmul.f32 %v53, %v458
    %v496 = vmul.f32 %v54, %v458
    %v497 = vmul.f32 %v55, %v462
    %v498 = vmul.f32 %v56, %v462
    %v499 = vmul.f32 %v57, %v466
    %v500 = vmul.f32 %v58, %v466
    %v501 = vmul.f32 %v59, %v470
    %v502 = vmul.f32 %v60, %v470
    %503 = vst [vmem:[#allocation5] sm:$0xff] %v471
    %504 = vst [vmem:[#allocation5 + $0x8] sm:$0xff] %v472
    %505 = vst [vmem:[#allocation5 + $0x10] sm:$0xff] %v473
    %506 = vst [vmem:[#allocation5 + $0x18] sm:$0xff] %v474
    %507 = vst [vmem:[#allocation5 + $0x20] sm:$0xff] %v475
    %508 = vst [vmem:[#allocation5 + $0x28] sm:$0xff] %v476
    %509 = vst [vmem:[#allocation5 + $0x30] sm:$0xff] %v477
    %510 = vst [vmem:[#allocation5 + $0x38] sm:$0xff] %v478
    %511 = vst [vmem:[#allocation5 + $0x40] sm:$0xff] %v479
    %512 = vst [vmem:[#allocation5 + $0x48] sm:$0xff] %v480
    %513 = vst [vmem:[#allocation5 + $0x50] sm:$0xff] %v481
    %514 = vst [vmem:[#allocation5 + $0x58] sm:$0xff] %v482
    %515 = vst [vmem:[#allocation5 + $0x60] sm:$0xff] %v483
    %516 = vst [vmem:[#allocation5 + $0x68] sm:$0xff] %v484
    %517 = vst [vmem:[#allocation5 + $0x70] sm:$0xff] %v485
    %518 = vst [vmem:[#allocation5 + $0x78] sm:$0xff] %v486
    %519 = vst [vmem:[#allocation5 + $0x80] sm:$0xff] %v487
    %520 = vst [vmem:[#allocation5 + $0x88] sm:$0xff] %v488
    %521 = vst [vmem:[#allocation5 + $0x90] sm:$0xff] %v489
    %522 = vst [vmem:[#allocation5 + $0x98] sm:$0xff] %v490
    %523 = vst [vmem:[#allocation5 + $0xa0] sm:$0xff] %v491
    %524 = vst [vmem:[#allocation5 + $0xa8] sm:$0xff] %v492
    %525 = vst [vmem:[#allocation5 + $0xb0] sm:$0xff] %v493
    %526 = vst [vmem:[#allocation5 + $0xb8] sm:$0xff] %v494
    %527 = vst [vmem:[#allocation5 + $0xc0] sm:$0xff] %v495
    %528 = vst [vmem:[#allocation5 + $0xc8] sm:$0xff] %v496
    %529 = vst [vmem:[#allocation5 + $0xd0] sm:$0xff] %v497
    %530 = vst [vmem:[#allocation5 + $0xd8] sm:$0xff] %v498
    %531 = vst [vmem:[#allocation5 + $0xe0] sm:$0xff] %v499
    %532 = vst [vmem:[#allocation5 + $0xe8] sm:$0xff] %v500
    %533 = vst [vmem:[#allocation5 + $0xf0] sm:$0xff] %v501
    %534 = vst [vmem:[#allocation5 + $0xf8] sm:$0xff] %v502
    // Predicated region
    $region18: #{tpu_custom_call.1} parent=1 // pred_check
      _
    $region19: #{tpu_custom_call.1} parent=1 // pred_check_branch
      %536 = sbr.rel (0) target = $region21
    $region20: #{tpu_custom_call.1} parent=1 // pred_region
      %s538 = ssub.s32 4096, 4096
      %539 = vsyncadd [#allocation4], %s538
      %s540 = sshll.u32 [#allocation5], 4
      %s541 = int_to_ptr.vmem [resolvable:$true] %s540
      %546 = dma.vmem_to_hbm [thread:$0]  %s541, 4096, %s3, [#allocation4], 256, 256, 16
    $region21: #{tpu_custom_call.1} parent=1 // pred_fallthru
      _
    // Predicated region
    $region22: #{tpu_custom_call.1} parent=1 // pred_check
      _
    $region23: #{tpu_custom_call.1} parent=1 // pred_check_branch
      %548 = sbr.rel (0) target = $region25
    $region24: #{tpu_custom_call.1} parent=1 // pred_region
      %549 = dma.done [#allocation4], 4096
    $region25: #{tpu_custom_call.1} parent=1 // pred_fallthru
      _
    %550 = vsyncpa [#allocation3], 1
    %551 = vsyncpa [#allocation4], 1

</llo_original>
